<compile_context>
chip_gen: v7x
topology: tpu7x:2x2x1
jax: 0.10.0
libtpu: 0.0.40
codegen_flags: <defaults>
</compile_context>

<pallas_src>
import jax
import jax.numpy as jnp
from jax.experimental import pallas as pl
from jax.experimental.pallas import tpu as pltpu


def _ignite_dummy_kernel(count_ref, new_count_ref):
    # self.count += 1.0  — the only real work in the module, pure scalar path.
    new_count_ref[0] = count_ref[0] + 1.0


def ignite_dummy_forward(count, *args):
    """One forward pass of IgniteDummyModel.

    Args:
      count: float32[1] current counter state (functional stand-in for self.count).
      *args: ignored inputs (the module never reads them; they are NOT passed
             to the kernel so they create no data dependency).

    Returns:
      (result, reported_x, new_count):
        result:     float32 scalar 0.0            (forward return value)
        reported_x: float32[1] pre-increment count (the report({'x': ...}) value)
        new_count:  float32[1] updated counter state
    """
    del args  # IgniteDummyModel.forward ignores *args entirely.

    smem_spec = pl.BlockSpec(memory_space=pltpu.SMEM)
    new_count = pl.pallas_call(
        _ignite_dummy_kernel,
        out_shape=jax.ShapeDtypeStruct((1,), jnp.float32),
        in_specs=[smem_spec],
        out_specs=smem_spec,
        # Advisory: tell XLA this custom call is negligible so it doesn't
        # pessimize scheduling of surrounding real work.
        cost_estimate=pl.CostEstimate(flops=1, transcendentals=0, bytes_accessed=8),
    )(count)

    reported_x = count                    # report({'x': self.count}) — identity, zero cost
    result = jnp.zeros((), jnp.float32)   # return 0.0 — compile-time constant, no kernel cost
    return result, reported_x, new_count


if __name__ == "__main__":
    key = jax.random.PRNGKey(0)
    # Small NCHW-ish dummy input consistent with the test harness; the module
    # ignores it, and it is never handed to the Pallas kernel.
    x = jax.random.normal(key, (2, 4, 16, 16), dtype=jnp.float32)

    count = jnp.zeros((1,), dtype=jnp.float32)  # self.count = 0.0

    # Call forward twice to exercise the stateful counter.
    res0, rep0, count = ignite_dummy_forward(count, x)
    res1, rep1, count = ignite_dummy_forward(count, x)
    jax.block_until_ready((res0, rep0, res1, rep1, count))

    assert float(res0) == 0.0 and float(res1) == 0.0  # return 0.0 each call
    assert float(rep0[0]) == 0.0                      # reported x on call 1
    assert float(rep1[0]) == 1.0                      # reported x on call 2
    assert float(count[0]) == 2.0                     # self.count after 2 calls

    print("KERNEL_OK")
</pallas_src>

<mosaic_0001>
module attributes {stable_mosaic.version = 11 : i64} {
  func.func @_ignite_dummy_kernel(%arg0: memref<1xf32, #tpu.memory_space<smem>>, %arg1: memref<1xf32, #tpu.memory_space<smem>>) attributes {dimension_semantics = [], scalar_prefetch = 0 : i64, scratch_operands = 0 : i64, tpu.core_type = #tpu.core_type<tc>} {
    %c0 = arith.constant 0 : index
    %0 = memref.load %arg0[%c0] : memref<1xf32, #tpu.memory_space<smem>>
    %cst = arith.constant 1.000000e+00 : f32
    %1 = arith.addf %0, %cst : f32
    %c0_0 = arith.constant 0 : index
    %2 = memref.load %arg1[%c0_0] : memref<1xf32, #tpu.memory_space<smem>>
    memref.store %1, %arg1[%c0_0] : memref<1xf32, #tpu.memory_space<smem>>
    return
  }
}

</mosaic_0001>

<llo_original>
// kernel: tpu_custom_call.1
$region0: #{tpu_custom_call.1}
  #allocation0 [shape = 'u32[]', space=smem, size = 0x4, offset = 0x4, fixed_abs, tag = 'smem constant byte address 0x4 - core index']
  #allocation1 [shape = 'u32[144,128]{1,0:T(1,128)}', space=vmem, size = 0x12000, scoped, tag = 'internal scratch']
  #allocation2 [shape = 'f32[1]{0:T(128)S(6)}', space=smem, size = 0x200, scoped, tag = 'scoped memory for tpu_custom_call.1']
  %s0 = inlined_call_operand.<no memory space> [shape: f32[1], index: 0, kind: input, shape index: {}]
  %s1 = inlined_call_operand.hbm [shape: f32[1], index: 1, kind: output, shape index: {}]
  %s2 = sld [smem:[#allocation0]]
  $region14: #{tpu_custom_call.1} parent=0
    _
  %s4 = ssub.s32 1, %s2
  %s5 = scalar_select 0, %s4, %s2
  %6 = sst [smem:[#allocation2]] %s0
  $region1: #{tpu_custom_call.1} parent=0
    #allocation3 [shape = 'u8[512]{0}', space=smem, size = 0x200, scoped, tag = 'output window, operand 0, single buffered']
    #allocation4 [shape = 's32[1]{0}', space=sflag, size = 0x4, scoped, tag = 'scoped memory for tpu_custom_call.1']
    %7 = vsyncpa [#allocation4], 0
    // Predicated region
    $region2: #{tpu_custom_call.1} parent=1 // pred_check
      _
    $region3: #{tpu_custom_call.1} parent=1 // pred_check_branch
      %9 = sbr.rel (0) target = $region5
    $region4: #{tpu_custom_call.1} parent=1 // pred_region
      _
    $region5: #{tpu_custom_call.1} parent=1 // pred_fallthru
      _
    %s10 = sld [smem:[#allocation2]]
    %s11 = sadd.f32 %s10, 1.0
    %s12 = scalar_lea.smem [#allocation3], 0
    %13 = sst [smem:[%s12]] %s11
    // Predicated region
    $region6: #{tpu_custom_call.1} parent=1 // pred_check
      _
    $region7: #{tpu_custom_call.1} parent=1 // pred_check_branch
      %15 = sbr.rel (0) target = $region9
    $region8: #{tpu_custom_call.1} parent=1 // pred_region
      %s17 = ssub.s32 16, 16
      %18 = vsyncadd [#allocation4], %s17
      %21 = dma.smem_to_hbm [#allocation3], 16, %s1, [#allocation4]
    $region9: #{tpu_custom_call.1} parent=1 // pred_fallthru
      _
    // Predicated region
    $region10: #{tpu_custom_call.1} parent=1 // pred_check
      _
    $region11: #{tpu_custom_call.1} parent=1 // pred_check_branch
      %23 = sbr.rel (0) target = $region13
    $region12: #{tpu_custom_call.1} parent=1 // pred_region
      %24 = dma.done [#allocation4], 16
    $region13: #{tpu_custom_call.1} parent=1 // pred_fallthru
      _
    %25 = sfence
    %26 = vsyncpa [#allocation4], 1

</llo_original>
